<compile_context>
chip_gen: v5e
topology: v5e:2x2
jax: 0.10.0
libtpu: 0.0.40
codegen_flags: <defaults>
</compile_context>

<pallas_src>
import functools

import jax
import jax.numpy as jnp
import numpy as np
from jax.experimental import pallas as pl
from jax.experimental.pallas import tpu as pltpu


# --------------------------------------------------------------------------
# Pallas kernel: full MLP for one batch tile.
# --------------------------------------------------------------------------
def clinical_mlp_kernel(x_ref,
                        w1_ref, b1_ref,
                        w2_ref, b2_ref,
                        w3_ref, b3_ref,
                        wl_ref, bl_ref,
                        wo_ref, bo_ref,
                        lat_ref, pred_ref):
    # layer 1: Linear -> ReLU           (BN1 affine is folded into w2/b2)
    h = jnp.dot(x_ref[...], w1_ref[...], preferred_element_type=jnp.float32)
    h = jnp.maximum(h + b1_ref[...], 0.0)

    # layer 2: (BN1-folded) Linear -> ReLU
    h = jnp.dot(h, w2_ref[...], preferred_element_type=jnp.float32)
    h = jnp.maximum(h + b2_ref[...], 0.0)

    # layer 3: (BN2-folded) Linear -> ReLU
    h = jnp.dot(h, w3_ref[...], preferred_element_type=jnp.float32)
    h = jnp.maximum(h + b3_ref[...], 0.0)

    # latent layer: (BN3-folded) Linear -> ReLU      (dropout is identity in eval)
    lat = jnp.dot(h, wl_ref[...], preferred_element_type=jnp.float32)
    lat = jnp.maximum(lat + bl_ref[...], 0.0)
    lat_ref[...] = lat

    # output layer: Linear -> ReLU
    pred = jnp.dot(lat, wo_ref[...], preferred_element_type=jnp.float32)
    pred_ref[...] = jnp.maximum(pred + bo_ref[...], 0.0)


# --------------------------------------------------------------------------
# Wrapper: flatten, fold BN affines into the following layer, pallas_call.
# --------------------------------------------------------------------------
def _bn_affine(gamma, beta, mean, var, eps=1e-5):
    scale = gamma / jnp.sqrt(var + eps)
    shift = beta - mean * scale
    return scale.astype(jnp.float32), shift.astype(jnp.float32)


def clinical_covariate_forward(x, params):
    # Flatten exactly like the PyTorch module.
    if x.ndim != 2:
        x = x.reshape(x.shape[0], -1)
    x = x.astype(jnp.float32)
    B, in_dim = x.shape

    # PyTorch nn.Linear stores weight as (out, in); transpose to (in, out).
    w1 = params["w1"].T.astype(jnp.float32)
    w2 = params["w2"].T.astype(jnp.float32)
    w3 = params["w3"].T.astype(jnp.float32)
    wl = params["wl"].T.astype(jnp.float32)
    wo = params["wo"].T.astype(jnp.float32)
    b1 = params["b1"].astype(jnp.float32)
    b2 = params["b2"].astype(jnp.float32)
    b3 = params["b3"].astype(jnp.float32)
    bl = params["bl"].astype(jnp.float32)
    bo = params["bo"].astype(jnp.float32)

    no_units = w1.shape[1]
    latent_dim = wl.shape[1]

    # Fold BN_i (eval-mode affine) into layer i+1's weights/bias:
    #   relu(Lin_i(x))*s + t  feeding  Lin_{i+1}  ==  relu(Lin_i(x)) feeding
    #   Lin_{i+1} with W' = diag(s) @ W  and  b' = t @ W + b.
    s1, t1 = _bn_affine(params["g1"], params["be1"], params["m1"], params["v1"])
    s2, t2 = _bn_affine(params["g2"], params["be2"], params["m2"], params["v2"])
    s3, t3 = _bn_affine(params["g3"], params["be3"], params["m3"], params["v3"])

    w2f = s1[:, None] * w2
    b2f = t1 @ w2 + b2
    w3f = s2[:, None] * w3
    b3f = t2 @ w3 + b3
    wlf = s3[:, None] * wl
    blf = t3 @ wl + bl

    # Biases as (1, N) rows (lane-resident, broadcast over the batch sublanes).
    b1r = b1.reshape(1, no_units)
    b2r = b2f.reshape(1, no_units)
    b3r = b3f.reshape(1, no_units)
    blr = blf.reshape(1, latent_dim)
    bor = bo.reshape(1, 1)

    # Batch tiling: pad batch to a multiple of the tile (sublane-aligned).
    tb = 128 if B >= 128 else max(8, ((B + 7) // 8) * 8)
    bp = ((B + tb - 1) // tb) * tb
    if bp != B:
        x = jnp.pad(x, ((0, bp - B), (0, 0)))

    full = lambda i: (0, 0)          # weights / biases: whole array every step
    tile = lambda i: (i, 0)          # activations: batch-tiled

    lat_p, pred_p = pl.pallas_call(
        clinical_mlp_kernel,
        out_shape=(jax.ShapeDtypeStruct((bp, latent_dim), jnp.float32),
                   jax.ShapeDtypeStruct((bp, 1), jnp.float32)),
        grid_spec=pltpu.PrefetchScalarGridSpec(
            num_scalar_prefetch=0,
            grid=(bp // tb,),
            in_specs=[
                pl.BlockSpec((tb, in_dim), tile),
                pl.BlockSpec((in_dim, no_units), full),
                pl.BlockSpec((1, no_units), full),
                pl.BlockSpec((no_units, no_units), full),
                pl.BlockSpec((1, no_units), full),
                pl.BlockSpec((no_units, no_units), full),
                pl.BlockSpec((1, no_units), full),
                pl.BlockSpec((no_units, latent_dim), full),
                pl.BlockSpec((1, latent_dim), full),
                pl.BlockSpec((latent_dim, 1), full),
                pl.BlockSpec((1, 1), full),
            ],
            out_specs=(pl.BlockSpec((tb, latent_dim), tile),
                       pl.BlockSpec((tb, 1), tile)),
        ),
        compiler_params=pltpu.CompilerParams(
            dimension_semantics=("parallel",)),
    )(x, w1, b1r, w2f, b2r, w3f, b3r, wlf, blr, wo, bor)

    return lat_p[:B], pred_p[:B]


# --------------------------------------------------------------------------
# Pure-JAX reference (mirrors the PyTorch forward in eval mode).
# --------------------------------------------------------------------------
def clinical_covariate_ref(x, params, eps=1e-5):
    if x.ndim != 2:
        x = x.reshape(x.shape[0], -1)
    h = x.astype(jnp.float32)
    for i in ("1", "2", "3"):
        h = jax.nn.relu(h @ params["w" + i].T + params["b" + i])      # Linear + ReLU
        s = params["g" + i] / jnp.sqrt(params["v" + i] + eps)         # BatchNorm1d (eval)
        h = (h - params["m" + i]) * s + params["be" + i]
    # dropout: identity in eval mode
    lat = jax.nn.relu(h @ params["wl"].T + params["bl"])
    pred = jax.nn.relu(lat @ params["wo"].T + params["bo"])
    return lat, pred


# --------------------------------------------------------------------------
if __name__ == "__main__":
    key = jax.random.PRNGKey(0)
    B, input_dim, no_units, latent_dim = 8, 16, 128, 64
    ks = jax.random.split(key, 32)

    x = jax.random.normal(ks[0], (B, input_dim), jnp.float32)

    def lin(kw, kb, din, dout):
        return (0.2 * jax.random.normal(ks[kw], (dout, din), jnp.float32),
                0.1 * jax.random.normal(ks[kb], (dout,), jnp.float32))

    def bn(k0, k1, k2, k3, c):
        return (1.0 + 0.1 * jax.random.normal(ks[k0], (c,), jnp.float32),   # gamma
                0.1 * jax.random.normal(ks[k1], (c,), jnp.float32),          # beta
                0.1 * jax.random.normal(ks[k2], (c,), jnp.float32),          # running mean
                0.5 + jnp.abs(jax.random.normal(ks[k3], (c,), jnp.float32))) # running var

    w1, b1 = lin(1, 2, input_dim, no_units)
    w2, b2 = lin(3, 4, no_units, no_units)
    w3, b3 = lin(5, 6, no_units, no_units)
    wl, bl = lin(7, 8, no_units, latent_dim)
    wo, bo = lin(9, 10, latent_dim, 1)
    g1, be1, m1, v1 = bn(11, 12, 13, 14, no_units)
    g2, be2, m2, v2 = bn(15, 16, 17, 18, no_units)
    g3, be3, m3, v3 = bn(19, 20, 21, 22, no_units)

    params = dict(
        w1=w1, b1=b1, g1=g1, be1=be1, m1=m1, v1=v1,
        w2=w2, b2=b2, g2=g2, be2=be2, m2=m2, v2=v2,
        w3=w3, b3=b3, g3=g3, be3=be3, m3=m3, v3=v3,
        wl=wl, bl=bl, wo=wo, bo=bo,
    )

    lat, pred = clinical_covariate_forward(x, params)
    lat = jax.block_until_ready(lat)
    pred = jax.block_until_ready(pred)

    lat_ref, pred_ref = clinical_covariate_ref(x, params)
    lat_ref = jax.block_until_ready(lat_ref)
    pred_ref = jax.block_until_ready(pred_ref)

    assert lat.shape == (B, latent_dim), lat.shape
    assert pred.shape == (B, 1), pred.shape
    np.testing.assert_allclose(np.asarray(lat), np.asarray(lat_ref),
                               rtol=1e-4, atol=1e-4)
    np.testing.assert_allclose(np.asarray(pred), np.asarray(pred_ref),
                               rtol=1e-4, atol=1e-4)
    print("KERNEL_OK")
</pallas_src>

<mosaic_0001>
module attributes {stable_mosaic.version = 11 : i64} {
  func.func @clinical_mlp_kernel(%arg0: i32, %arg1: memref<8x16xf32, #tpu.memory_space<vmem>>, %arg2: memref<16x128xf32, #tpu.memory_space<vmem>>, %arg3: memref<1x128xf32, #tpu.memory_space<vmem>>, %arg4: memref<128x128xf32, #tpu.memory_space<vmem>>, %arg5: memref<1x128xf32, #tpu.memory_space<vmem>>, %arg6: memref<128x128xf32, #tpu.memory_space<vmem>>, %arg7: memref<1x128xf32, #tpu.memory_space<vmem>>, %arg8: memref<128x64xf32, #tpu.memory_space<vmem>>, %arg9: memref<1x64xf32, #tpu.memory_space<vmem>>, %arg10: memref<64x1xf32, #tpu.memory_space<vmem>>, %arg11: memref<1x1xf32, #tpu.memory_space<vmem>>, %arg12: memref<8x64xf32, #tpu.memory_space<vmem>>, %arg13: memref<8x1xf32, #tpu.memory_space<vmem>>) attributes {dimension_semantics = [#tpu.dimension_semantics<parallel>], iteration_bounds = array<i64: 1>, scalar_prefetch = 0 : i64, scratch_operands = 0 : i64, tpu.core_type = #tpu.core_type<tc>, window_params = [{transform_indices = @transform_0, window_bounds = array<i64: 8, 16>}, {pipeline_mode = #tpu.pipeline_mode<synchronous>, transform_indices = @transform_1, window_bounds = array<i64: 16, 128>}, {pipeline_mode = #tpu.pipeline_mode<synchronous>, transform_indices = @transform_2, window_bounds = array<i64: 1, 128>}, {pipeline_mode = #tpu.pipeline_mode<synchronous>, transform_indices = @transform_3, window_bounds = array<i64: 128, 128>}, {pipeline_mode = #tpu.pipeline_mode<synchronous>, transform_indices = @transform_4, window_bounds = array<i64: 1, 128>}, {pipeline_mode = #tpu.pipeline_mode<synchronous>, transform_indices = @transform_5, window_bounds = array<i64: 128, 128>}, {pipeline_mode = #tpu.pipeline_mode<synchronous>, transform_indices = @transform_6, window_bounds = array<i64: 1, 128>}, {pipeline_mode = #tpu.pipeline_mode<synchronous>, transform_indices = @transform_7, window_bounds = array<i64: 128, 64>}, {pipeline_mode = #tpu.pipeline_mode<synchronous>, transform_indices = @transform_8, window_bounds = array<i64: 1, 64>}, {pipeline_mode = #tpu.pipeline_mode<synchronous>, transform_indices = @transform_9, window_bounds = array<i64: 64, 1>}, {pipeline_mode = #tpu.pipeline_mode<synchronous>, transform_indices = @transform_10, window_bounds = array<i64: 1, 1>}, {transform_indices = @transform_11, window_bounds = array<i64: 8, 64>}, {transform_indices = @transform_12, window_bounds = array<i64: 8, 1>}]} {
    %c0 = arith.constant 0 : index
    %c0_0 = arith.constant 0 : index
    %0 = vector.load %arg1[%c0, %c0_0] : memref<8x16xf32, #tpu.memory_space<vmem>>, vector<8x16xf32>
    %c0_1 = arith.constant 0 : index
    %c0_2 = arith.constant 0 : index
    %1 = vector.load %arg2[%c0_1, %c0_2] : memref<16x128xf32, #tpu.memory_space<vmem>>, vector<16x128xf32>
    %cst = arith.constant dense<0.000000e+00> : vector<8x128xf32>
    %2 = tpu.matmul %0, %1, %cst {dimension_numbers = #tpu.dot_dimension_numbers<[1], [0], [0], [1], [0, 0, 1, 1], [], []>} : vector<8x16xf32>, vector<16x128xf32>, vector<8x128xf32> -> vector<8x128xf32>
    %c0_3 = arith.constant 0 : index
    %c0_4 = arith.constant 0 : index
    %3 = vector.load %arg3[%c0_3, %c0_4] : memref<1x128xf32, #tpu.memory_space<vmem>>, vector<1x128xf32>
    %4 = vector.broadcast %3 : vector<1x128xf32> to vector<8x128xf32>
    %5 = arith.addf %2, %4 : vector<8x128xf32>
    %cst_5 = arith.constant 0.000000e+00 : f32
    %6 = vector.broadcast %cst_5 : f32 to vector<8x128xf32>
    %7 = arith.maximumf %5, %6 : vector<8x128xf32>
    %c0_6 = arith.constant 0 : index
    %c0_7 = arith.constant 0 : index
    %8 = vector.load %arg4[%c0_6, %c0_7] : memref<128x128xf32, #tpu.memory_space<vmem>>, vector<128x128xf32>
    %cst_8 = arith.constant dense<0.000000e+00> : vector<8x128xf32>
    %9 = tpu.matmul %7, %8, %cst_8 {dimension_numbers = #tpu.dot_dimension_numbers<[1], [0], [0], [1], [0, 0, 1, 1], [], []>} : vector<8x128xf32>, vector<128x128xf32>, vector<8x128xf32> -> vector<8x128xf32>
    %c0_9 = arith.constant 0 : index
    %c0_10 = arith.constant 0 : index
    %10 = vector.load %arg5[%c0_9, %c0_10] : memref<1x128xf32, #tpu.memory_space<vmem>>, vector<1x128xf32>
    %11 = vector.broadcast %10 : vector<1x128xf32> to vector<8x128xf32>
    %12 = arith.addf %9, %11 : vector<8x128xf32>
    %cst_11 = arith.constant 0.000000e+00 : f32
    %13 = vector.broadcast %cst_11 : f32 to vector<8x128xf32>
    %14 = arith.maximumf %12, %13 : vector<8x128xf32>
    %c0_12 = arith.constant 0 : index
    %c0_13 = arith.constant 0 : index
    %15 = vector.load %arg6[%c0_12, %c0_13] : memref<128x128xf32, #tpu.memory_space<vmem>>, vector<128x128xf32>
    %cst_14 = arith.constant dense<0.000000e+00> : vector<8x128xf32>
    %16 = tpu.matmul %14, %15, %cst_14 {dimension_numbers = #tpu.dot_dimension_numbers<[1], [0], [0], [1], [0, 0, 1, 1], [], []>} : vector<8x128xf32>, vector<128x128xf32>, vector<8x128xf32> -> vector<8x128xf32>
    %c0_15 = arith.constant 0 : index
    %c0_16 = arith.constant 0 : index
    %17 = vector.load %arg7[%c0_15, %c0_16] : memref<1x128xf32, #tpu.memory_space<vmem>>, vector<1x128xf32>
    %18 = vector.broadcast %17 : vector<1x128xf32> to vector<8x128xf32>
    %19 = arith.addf %16, %18 : vector<8x128xf32>
    %cst_17 = arith.constant 0.000000e+00 : f32
    %20 = vector.broadcast %cst_17 : f32 to vector<8x128xf32>
    %21 = arith.maximumf %19, %20 : vector<8x128xf32>
    %c0_18 = arith.constant 0 : index
    %c0_19 = arith.constant 0 : index
    %22 = vector.load %arg8[%c0_18, %c0_19] : memref<128x64xf32, #tpu.memory_space<vmem>>, vector<128x64xf32>
    %cst_20 = arith.constant dense<0.000000e+00> : vector<8x64xf32>
    %23 = tpu.matmul %21, %22, %cst_20 {dimension_numbers = #tpu.dot_dimension_numbers<[1], [0], [0], [1], [0, 0, 1, 1], [], []>} : vector<8x128xf32>, vector<128x64xf32>, vector<8x64xf32> -> vector<8x64xf32>
    %c0_21 = arith.constant 0 : index
    %c0_22 = arith.constant 0 : index
    %24 = vector.load %arg9[%c0_21, %c0_22] : memref<1x64xf32, #tpu.memory_space<vmem>>, vector<1x64xf32>
    %25 = vector.broadcast %24 : vector<1x64xf32> to vector<8x64xf32>
    %26 = arith.addf %23, %25 : vector<8x64xf32>
    %cst_23 = arith.constant 0.000000e+00 : f32
    %27 = vector.broadcast %cst_23 : f32 to vector<8x64xf32>
    %28 = arith.maximumf %26, %27 : vector<8x64xf32>
    %c0_24 = arith.constant 0 : index
    %c0_25 = arith.constant 0 : index
    %29 = vector.load %arg12[%c0_24, %c0_25] : memref<8x64xf32, #tpu.memory_space<vmem>>, vector<8x64xf32>
    tpu.vector_store %arg12[%c0_24, %c0_25], %28 {strides = array<i32>} : memref<8x64xf32, #tpu.memory_space<vmem>>, vector<8x64xf32>,
    %c0_26 = arith.constant 0 : index
    %c0_27 = arith.constant 0 : index
    %30 = vector.load %arg10[%c0_26, %c0_27] : memref<64x1xf32, #tpu.memory_space<vmem>>, vector<64x1xf32>
    %cst_28 = arith.constant dense<0.000000e+00> : vector<8x1xf32>
    %31 = tpu.matmul %28, %30, %cst_28 {dimension_numbers = #tpu.dot_dimension_numbers<[1], [0], [0], [1], [0, 0, 1, 1], [], []>} : vector<8x64xf32>, vector<64x1xf32>, vector<8x1xf32> -> vector<8x1xf32>
    %c0_29 = arith.constant 0 : index
    %c0_30 = arith.constant 0 : index
    %32 = vector.load %arg11[%c0_29, %c0_30] : memref<1x1xf32, #tpu.memory_space<vmem>>, vector<1x1xf32>
    %33 = vector.broadcast %32 : vector<1x1xf32> to vector<8x1xf32>
    %34 = arith.addf %31, %33 : vector<8x1xf32>
    %cst_31 = arith.constant 0.000000e+00 : f32
    %35 = vector.broadcast %cst_31 : f32 to vector<8x1xf32>
    %36 = arith.maximumf %34, %35 : vector<8x1xf32>
    %c0_32 = arith.constant 0 : index
    %c0_33 = arith.constant 0 : index
    %37 = vector.load %arg13[%c0_32, %c0_33] : memref<8x1xf32, #tpu.memory_space<vmem>>, vector<8x1xf32>
    tpu.vector_store %arg13[%c0_32, %c0_33], %36 {strides = array<i32>} : memref<8x1xf32, #tpu.memory_space<vmem>>, vector<8x1xf32>,
    return
  }
  func.func @transform_0(%arg0: i32) -> (i32, i32) {
    %c0_i32 = arith.constant 0 : i32
    %c0_i32_0 = arith.constant 0 : i32
    return %arg0, %c0_i32 : i32, i32
  }
  func.func @transform_1(%arg0: i32) -> (i32, i32) {
    %c0_i32 = arith.constant 0 : i32
    %c0_i32_0 = arith.constant 0 : i32
    %c0_i32_1 = arith.constant 0 : i32
    return %c0_i32, %c0_i32_0 : i32, i32
  }
  func.func @transform_2(%arg0: i32) -> (i32, i32) {
    %c0_i32 = arith.constant 0 : i32
    %c0_i32_0 = arith.constant 0 : i32
    %c0_i32_1 = arith.constant 0 : i32
    return %c0_i32, %c0_i32_0 : i32, i32
  }
  func.func @transform_3(%arg0: i32) -> (i32, i32) {
    %c0_i32 = arith.constant 0 : i32
    %c0_i32_0 = arith.constant 0 : i32
    %c0_i32_1 = arith.constant 0 : i32
    return %c0_i32, %c0_i32_0 : i32, i32
  }
  func.func @transform_4(%arg0: i32) -> (i32, i32) {
    %c0_i32 = arith.constant 0 : i32
    %c0_i32_0 = arith.constant 0 : i32
    %c0_i32_1 = arith.constant 0 : i32
    return %c0_i32, %c0_i32_0 : i32, i32
  }
  func.func @transform_5(%arg0: i32) -> (i32, i32) {
    %c0_i32 = arith.constant 0 : i32
    %c0_i32_0 = arith.constant 0 : i32
    %c0_i32_1 = arith.constant 0 : i32
    return %c0_i32, %c0_i32_0 : i32, i32
  }
  func.func @transform_6(%arg0: i32) -> (i32, i32) {
    %c0_i32 = arith.constant 0 : i32
    %c0_i32_0 = arith.constant 0 : i32
    %c0_i32_1 = arith.constant 0 : i32
    return %c0_i32, %c0_i32_0 : i32, i32
  }
  func.func @transform_7(%arg0: i32) -> (i32, i32) {
    %c0_i32 = arith.constant 0 : i32
    %c0_i32_0 = arith.constant 0 : i32
    %c0_i32_1 = arith.constant 0 : i32
    return %c0_i32, %c0_i32_0 : i32, i32
  }
  func.func @transform_8(%arg0: i32) -> (i32, i32) {
    %c0_i32 = arith.constant 0 : i32
    %c0_i32_0 = arith.constant 0 : i32
    %c0_i32_1 = arith.constant 0 : i32
    return %c0_i32, %c0_i32_0 : i32, i32
  }
  func.func @transform_9(%arg0: i32) -> (i32, i32) {
    %c0_i32 = arith.constant 0 : i32
    %c0_i32_0 = arith.constant 0 : i32
    %c0_i32_1 = arith.constant 0 : i32
    return %c0_i32, %c0_i32_0 : i32, i32
  }
  func.func @transform_10(%arg0: i32) -> (i32, i32) {
    %c0_i32 = arith.constant 0 : i32
    %c0_i32_0 = arith.constant 0 : i32
    %c0_i32_1 = arith.constant 0 : i32
    return %c0_i32, %c0_i32_0 : i32, i32
  }
  func.func @transform_11(%arg0: i32) -> (i32, i32) {
    %c0_i32 = arith.constant 0 : i32
    %c0_i32_0 = arith.constant 0 : i32
    return %arg0, %c0_i32 : i32, i32
  }
  func.func @transform_12(%arg0: i32) -> (i32, i32) {
    %c0_i32 = arith.constant 0 : i32
    %c0_i32_0 = arith.constant 0 : i32
    return %arg0, %c0_i32 : i32, i32
  }
}

</mosaic_0001>

<llo_original>
// kernel: tpu_custom_call.1
$region0: #{tpu_custom_call.1}
  #allocation0 [shape = 'u32[]', space=smem, size = 0x4, offset = 0x4, fixed_abs, tag = 'smem constant byte address 0x4 - core index']
  #allocation1 [shape = 'u32[72,128]{1,0:T(1,128)}', space=vmem, size = 0x9000, scoped, tag = 'internal scratch']
  #allocation2 [shape = 'f32[1,1]{1,0:T(1,128)S(1)}', space=vmem, size = 0x200, scoped, tag = 'scoped memory for tpu_custom_call.1']
  %s0 = inlined_call_operand.vmem [shape: f32[8,16], index: 0, kind: input, shape index: {}]
  %s1 = inlined_call_operand.vmem [shape: f32[16,128], index: 1, kind: input, shape index: {}]
  %s2 = inlined_call_operand.vmem [shape: f32[1,128], index: 2, kind: input, shape index: {}]
  %s3 = inlined_call_operand.vmem [shape: f32[128,128], index: 3, kind: input, shape index: {}]
  %s4 = inlined_call_operand.vmem [shape: f32[1,128], index: 4, kind: input, shape index: {}]
  %s5 = inlined_call_operand.hbm [shape: f32[128,128], index: 5, kind: input, shape index: {}]
  %s6 = inlined_call_operand.vmem [shape: f32[1,128], index: 6, kind: input, shape index: {}]
  %s7 = inlined_call_operand.vmem [shape: f32[128,64], index: 7, kind: input, shape index: {}]
  %s8 = inlined_call_operand.vmem [shape: f32[1,64], index: 8, kind: input, shape index: {}]
  %s9 = inlined_call_operand.vmem [shape: f32[64,1], index: 9, kind: input, shape index: {}]
  %s10 = inlined_call_operand.<no memory space> [shape: f32[1,1], index: 10, kind: input, shape index: {}]
  %s11 = inlined_call_operand.hbm [shape: f32[8,64], index: 11, kind: output, shape index: {0}]
  %s12 = inlined_call_operand.vmem [shape: f32[8,1], index: 12, kind: output, shape index: {1}]
  %13 = xla_tuple %s11, %s12
  %s14 = sld [smem:[#allocation0]]
  $region66: #{tpu_custom_call.1} parent=0
    _
  %s16 = ssub.s32 1, %s14
  %s17 = scalar_select 0, %s16, %s14
  %v18 = vstv %s10
  %19 = vst [vmem:[#allocation2] sm:$0x1] %v18
  $region1: #{tpu_custom_call.1} parent=0
    #allocation3 [shape = 'u8[65536]{0}', space=vmem, size = 0x10000, scoped, tag = 'input window, operand 5, single buffered']
    #allocation4 [shape = 's32[1]{0}', space=sflag, size = 0x4, scoped, tag = 'scoped memory for tpu_custom_call.1']
    #allocation5 [shape = 's32[1]{0}', space=sflag, size = 0x4, scoped, tag = 'scoped memory for tpu_custom_call.1']
    #allocation6 [shape = 'u8[4096]{0}', space=vmem, size = 0x1000, scoped, tag = 'output window, operand 0, single buffered']
    %20 = vsyncpa [#allocation4], 0
    %21 = vsyncpa [#allocation5], 0
    // Predicated region
    $region2: #{tpu_custom_call.1} parent=1 // pred_check
      _
    $region3: #{tpu_custom_call.1} parent=1 // pred_check_branch
      %23 = sbr.rel (0) target = $region5
    $region4: #{tpu_custom_call.1} parent=1 // pred_region
      _
    $region5: #{tpu_custom_call.1} parent=1 // pred_fallthru
      _
    // Predicated region
    $region6: #{tpu_custom_call.1} parent=1 // pred_check
      _
    $region7: #{tpu_custom_call.1} parent=1 // pred_check_branch
      %25 = sbr.rel (0) target = $region9
    $region8: #{tpu_custom_call.1} parent=1 // pred_region
      _
    $region9: #{tpu_custom_call.1} parent=1 // pred_fallthru
      _
    // Predicated region
    $region10: #{tpu_custom_call.1} parent=1 // pred_check
      _
    $region11: #{tpu_custom_call.1} parent=1 // pred_check_branch
      %27 = sbr.rel (0) target = $region13
    $region12: #{tpu_custom_call.1} parent=1 // pred_region
      _
    $region13: #{tpu_custom_call.1} parent=1 // pred_fallthru
      _
    // Predicated region
    $region14: #{tpu_custom_call.1} parent=1 // pred_check
      _
    $region15: #{tpu_custom_call.1} parent=1 // pred_check_branch
      %29 = sbr.rel (0) target = $region17
    $region16: #{tpu_custom_call.1} parent=1 // pred_region
      _
    $region17: #{tpu_custom_call.1} parent=1 // pred_fallthru
      _
    // Predicated region
    $region18: #{tpu_custom_call.1} parent=1 // pred_check
      _
    $region19: #{tpu_custom_call.1} parent=1 // pred_check_branch
      %31 = sbr.rel (0) target = $region21
    $region20: #{tpu_custom_call.1} parent=1 // pred_region
      _
    $region21: #{tpu_custom_call.1} parent=1 // pred_fallthru
      _
    // Predicated region
    $region22: #{tpu_custom_call.1} parent=1 // pred_check
      _
    $region23: #{tpu_custom_call.1} parent=1 // pred_check_branch
      %33 = sbr.rel (0) target = $region25
    $region24: #{tpu_custom_call.1} parent=1 // pred_region
      %35 = vsyncadd [#allocation4], 0
      %s36 = sshll.u32 %s5, 4
      %s37 = int_to_ptr.hbm [resolvable:$true] %s36
      %s38 = sshll.u32 [#allocation3], 4
      %s39 = int_to_ptr.vmem [resolvable:$true] %s38
      %44 = dma.hbm_to_vmem [thread:$0]  %s37, 2048, %s39, [#allocation4], 128, 128, 8
    $region25: #{tpu_custom_call.1} parent=1 // pred_fallthru
      _
    // Predicated region
    $region26: #{tpu_custom_call.1} parent=1 // pred_check
      _
    $region27: #{tpu_custom_call.1} parent=1 // pred_check_branch
      %46 = sbr.rel (0) target = $region29
    $region28: #{tpu_custom_call.1} parent=1 // pred_region
      _
    $region29: #{tpu_custom_call.1} parent=1 // pred_fallthru
      _
    // Predicated region
    $region30: #{tpu_custom_call.1} parent=1 // pred_check
      _
    $region31: #{tpu_custom_call.1} parent=1 // pred_check_branch
      %48 = sbr.rel (0) target = $region33
    $region32: #{tpu_custom_call.1} parent=1 // pred_region
      _
    $region33: #{tpu_custom_call.1} parent=1 // pred_fallthru
      _
    // Predicated region
    $region34: #{tpu_custom_call.1} parent=1 // pred_check
      _
    $region35: #{tpu_custom_call.1} parent=1 // pred_check_branch
      %50 = sbr.rel (0) target = $region37
    $region36: #{tpu_custom_call.1} parent=1 // pred_region
      _
    $region37: #{tpu_custom_call.1} parent=1 // pred_fallthru
      _
    // Predicated region
    $region38: #{tpu_custom_call.1} parent=1 // pred_check
      _
    $region39: #{tpu_custom_call.1} parent=1 // pred_check_branch
      %52 = sbr.rel (0) target = $region41
    $region40: #{tpu_custom_call.1} parent=1 // pred_region
      _
    $region41: #{tpu_custom_call.1} parent=1 // pred_fallthru
      _
    // Predicated region
    $region42: #{tpu_custom_call.1} parent=1 // pred_check
      _
    $region43: #{tpu_custom_call.1} parent=1 // pred_check_branch
      %54 = sbr.rel (0) target = $region45
    $region44: #{tpu_custom_call.1} parent=1 // pred_region
      _
    $region45: #{tpu_custom_call.1} parent=1 // pred_fallthru
      _
    // Predicated region
    $region46: #{tpu_custom_call.1} parent=1 // pred_check
      _
    $region47: #{tpu_custom_call.1} parent=1 // pred_check_branch
      %56 = sbr.rel (0) target = $region49
    $region48: #{tpu_custom_call.1} parent=1 // pred_region
      %58 = dma.done [#allocation4], 2048
    $region49: #{tpu_custom_call.1} parent=1 // pred_fallthru
      _
    %v59 = vld [vmem:[%s0] sm:$0xff]
    %v60 = vld [vmem:[%s1] sm:$0xff]
    %v61 = vld [vmem:[%s1 + $0x8] sm:$0xff]
    %v62 = vld [vmem:[%s2] sm:$0x1]
    %v64 = vperm.slane %v62, 0
    %vm66 = vcmask 130048
    %v68 = vsel %vm66, %v59, 0
    %70 = vmatpush.msra.mxu0 0.0
    %71 = vmatpush.msra.mxu0 0.0
    %72 = vmatpush.msra.mxu0 0.0
    %73 = vmatpush.msra.mxu0 0.0
    %74 = vmatpush.msra.mxu0 0.0
    %75 = vmatpush.msra.mxu0 0.0
    %76 = vmatpush.msra.mxu0 0.0
    %77 = vmatpush.msra.mxu0 0.0
    %78 = vmatpush.msra.mxu0 0.0
    %79 = vmatpush.msra.mxu0 0.0
    %80 = vmatpush.msra.mxu0 0.0
    %81 = vmatpush.msra.mxu0 0.0
    %82 = vmatpush.msra.mxu0 0.0
    %83 = vmatpush.msra.mxu0 0.0
    %84 = vmatpush.msra.mxu0 %v61
    %85 = vmatpush.msra.mxu0 %v60
    %86 = vmatmul.f32.gmra.mxu0 %v68
    %v87 = vpop.f32.mrf.mxu0
    %v88 = vadd.f32 %v64, %v87
    %89 = vdwg.mxu0
    %v90 = vmax.f32 %v88, 0.0
    %v91 = vld [vmem:[%s3] sm:$0xff]
    %v92 = vld [vmem:[%s3 + $0x8] sm:$0xff]
    %v93 = vld [vmem:[%s3 + $0x10] sm:$0xff]
    %v94 = vld [vmem:[%s3 + $0x18] sm:$0xff]
    %v95 = vld [vmem:[%s3 + $0x20] sm:$0xff]
    %v96 = vld [vmem:[%s3 + $0x28] sm:$0xff]
    %v97 = vld [vmem:[%s3 + $0x30] sm:$0xff]
    %v98 = vld [vmem:[%s3 + $0x38] sm:$0xff]
    %v99 = vld [vmem:[%s3 + $0x40] sm:$0xff]
    %v100 = vld [vmem:[%s3 + $0x48] sm:$0xff]
    %v101 = vld [vmem:[%s3 + $0x50] sm:$0xff]
    %v102 = vld [vmem:[%s3 + $0x58] sm:$0xff]
    %v103 = vld [vmem:[%s3 + $0x60] sm:$0xff]
    %v104 = vld [vmem:[%s3 + $0x68] sm:$0xff]
    %v105 = vld [vmem:[%s3 + $0x70] sm:$0xff]
    %v106 = vld [vmem:[%s3 + $0x78] sm:$0xff]
    %v107 = vld [vmem:[%s4] sm:$0x1]
    %v109 = vperm.slane %v107, 0
    %111 = vmatpush.msra.mxu0 %v106
    %112 = vmatpush.msra.mxu0 %v105
    %113 = vmatpush.msra.mxu0 %v104
    %114 = vmatpush.msra.mxu0 %v103
    %115 = vmatpush.msra.mxu0 %v102
    %116 = vmatpush.msra.mxu0 %v101
    %117 = vmatpush.msra.mxu0 %v100
    %118 = vmatpush.msra.mxu0 %v99
    %119 = vmatpush.msra.mxu0 %v98
    %120 = vmatpush.msra.mxu0 %v97
    %121 = vmatpush.msra.mxu0 %v96
    %122 = vmatpush.msra.mxu0 %v95
    %123 = vmatpush.msra.mxu0 %v94
    %124 = vmatpush.msra.mxu0 %v93
    %125 = vmatpush.msra.mxu0 %v92
    %126 = vmatpush.msra.mxu0 %v91
    %127 = vmatmul.f32.gmra.mxu0 %v90
    %v128 = vpop.f32.mrf.mxu0
    %v129 = vadd.f32 %v109, %v128
    %130 = vdwg.mxu0
    %v131 = vmax.f32 %v129, 0.0
    %v132 = vld [vmem:[#allocation3] sm:$0xff]
    %v133 = vld [vmem:[#allocation3 + $0x8] sm:$0xff]
    %v134 = vld [vmem:[#allocation3 + $0x10] sm:$0xff]
    %v135 = vld [vmem:[#allocation3 + $0x18] sm:$0xff]
    %v136 = vld [vmem:[#allocation3 + $0x20] sm:$0xff]
    %v137 = vld [vmem:[#allocation3 + $0x28] sm:$0xff]
    %v138 = vld [vmem:[#allocation3 + $0x30] sm:$0xff]
    %v139 = vld [vmem:[#allocation3 + $0x38] sm:$0xff]
    %v140 = vld [vmem:[#allocation3 + $0x40] sm:$0xff]
    %v141 = vld [vmem:[#allocation3 + $0x48] sm:$0xff]
    %v142 = vld [vmem:[#allocation3 + $0x50] sm:$0xff]
    %v143 = vld [vmem:[#allocation3 + $0x58] sm:$0xff]
    %v144 = vld [vmem:[#allocation3 + $0x60] sm:$0xff]
    %v145 = vld [vmem:[#allocation3 + $0x68] sm:$0xff]
    %v146 = vld [vmem:[#allocation3 + $0x70] sm:$0xff]
    %v147 = vld [vmem:[#allocation3 + $0x78] sm:$0xff]
    %v148 = vld [vmem:[%s6] sm:$0x1]
    %v150 = vperm.slane %v148, 0
    %152 = vmatpush.msra.mxu0 %v147
    %153 = vmatpush.msra.mxu0 %v146
    %154 = vmatpush.msra.mxu0 %v145
    %155 = vmatpush.msra.mxu0 %v144
    %156 = vmatpush.msra.mxu0 %v143
    %157 = vmatpush.msra.mxu0 %v142
    %158 = vmatpush.msra.mxu0 %v141
    %159 = vmatpush.msra.mxu0 %v140
    %160 = vmatpush.msra.mxu0 %v139
    %161 = vmatpush.msra.mxu0 %v138
    %162 = vmatpush.msra.mxu0 %v137
    %163 = vmatpush.msra.mxu0 %v136
    %164 = vmatpush.msra.mxu0 %v135
    %165 = vmatpush.msra.mxu0 %v134
    %166 = vmatpush.msra.mxu0 %v133
    %167 = vmatpush.msra.mxu0 %v132
    %168 = vmatmul.f32.gmra.mxu0 %v131
    %v169 = vpop.f32.mrf.mxu0
    %v170 = vadd.f32 %v150, %v169
    %171 = vdwg.mxu0
    %v172 = vmax.f32 %v170, 0.0
    %v173 = vld [vmem:[%s7] sm:$0xff]
    %v174 = vld [vmem:[%s7 + $0x8] sm:$0xff]
    %v175 = vld [vmem:[%s7 + $0x10] sm:$0xff]
    %v176 = vld [vmem:[%s7 + $0x18] sm:$0xff]
    %v177 = vld [vmem:[%s7 + $0x20] sm:$0xff]
    %v178 = vld [vmem:[%s7 + $0x28] sm:$0xff]
    %v179 = vld [vmem:[%s7 + $0x30] sm:$0xff]
    %v180 = vld [vmem:[%s7 + $0x38] sm:$0xff]
    %v181 = vld [vmem:[%s7 + $0x40] sm:$0xff]
    %v182 = vld [vmem:[%s7 + $0x48] sm:$0xff]
    %v183 = vld [vmem:[%s7 + $0x50] sm:$0xff]
    %v184 = vld [vmem:[%s7 + $0x58] sm:$0xff]
    %v185 = vld [vmem:[%s7 + $0x60] sm:$0xff]
    %v186 = vld [vmem:[%s7 + $0x68] sm:$0xff]
    %v187 = vld [vmem:[%s7 + $0x70] sm:$0xff]
    %v188 = vld [vmem:[%s7 + $0x78] sm:$0xff]
    %v189 = vld [vmem:[%s8] sm:$0x1]
    %v191 = vperm.slane %v189, 0
    %193 = vmatpush.msra.mxu0 %v188
    %194 = vmatpush.msra.mxu0 %v187
    %195 = vmatpush.msra.mxu0 %v186
    %196 = vmatpush.msra.mxu0 %v185
    %197 = vmatpush.msra.mxu0 %v184
    %198 = vmatpush.msra.mxu0 %v183
    %199 = vmatpush.msra.mxu0 %v182
    %200 = vmatpush.msra.mxu0 %v181
    %201 = vmatpush.msra.mxu0 %v180
    %202 = vmatpush.msra.mxu0 %v179
    %203 = vmatpush.msra.mxu0 %v178
    %204 = vmatpush.msra.mxu0 %v177
    %205 = vmatpush.msra.mxu0 %v176
    %206 = vmatpush.msra.mxu0 %v175
    %207 = vmatpush.msra.mxu0 %v174
    %208 = vmatpush.msra.mxu0 %v173
    %209 = vmatmul.f32.gmra.mxu0 %v172
    %v210 = vpop.f32.mrf.mxu0
    %v211 = vadd.f32 %v191, %v210
    %212 = vdwg.mxu0
    %v213 = vmax.f32 %v211, 0.0
    %vm214 = vcmask 523264
    %215 = vst.msk [vmem:[#allocation6] sm:$0xff] %vm214, %v213
    %v216 = vld [vmem:[%s9] sm:$0xff]
    %v217 = vld [vmem:[%s9 + $0x8] sm:$0xff]
    %v218 = vld [vmem:[%s9 + $0x10] sm:$0xff]
    %v219 = vld [vmem:[%s9 + $0x18] sm:$0xff]
    %v220 = vld [vmem:[%s9 + $0x20] sm:$0xff]
    %v221 = vld [vmem:[%s9 + $0x28] sm:$0xff]
    %v222 = vld [vmem:[%s9 + $0x30] sm:$0xff]
    %v223 = vld [vmem:[%s9 + $0x38] sm:$0xff]
    %v224 = vld [vmem:[#allocation2] sm:$0x1]
    %v226 = vperm.slane %v224, 0
    %v229 = vsel %vm214, %v213, 0
    %231 = vmatpush.msra.mxu0 0.0
    %232 = vmatpush.msra.mxu0 0.0
    %233 = vmatpush.msra.mxu0 0.0
    %234 = vmatpush.msra.mxu0 0.0
    %235 = vmatpush.msra.mxu0 0.0
    %236 = vmatpush.msra.mxu0 0.0
    %237 = vmatpush.msra.mxu0 0.0
    %238 = vmatpush.msra.mxu0 0.0
    %239 = vmatpush.msra.mxu0 %v223
    %240 = vmatpush.msra.mxu0 %v222
    %241 = vmatpush.msra.mxu0 %v221
    %242 = vmatpush.msra.mxu0 %v220
    %243 = vmatpush.msra.mxu0 %v219
    %244 = vmatpush.msra.mxu0 %v218
    %245 = vmatpush.msra.mxu0 %v217
    %246 = vmatpush.msra.mxu0 %v216
    %247 = vmatmul.f32.gmra.mxu0 %v229
    %v248 = vpop.f32.mrf.mxu0
    %v249 = vadd.f32 %v226, %v248
    %250 = vdwg.mxu0
    %v251 = vmax.f32 %v249, 0.0
    %vm252 = vcmask 7168
    %253 = vst.msk [vmem:[%s12] sm:$0xff] %vm252, %v251
    // Predicated region
    $region50: #{tpu_custom_call.1} parent=1 // pred_check
      _
    $region51: #{tpu_custom_call.1} parent=1 // pred_check_branch
      %255 = sbr.rel (0) target = $region53
    $region52: #{tpu_custom_call.1} parent=1 // pred_region
      %257 = vsyncadd [#allocation5], 0
      %s259 = sshll.u32 [#allocation6], 4
      %s260 = int_to_ptr.vmem [resolvable:$true] %s259
      %s261 = sshll.u32 %s11, 4
      %s262 = int_to_ptr.hbm [resolvable:$true] %s261
      %264 = dma.vmem_to_hbm [thread:$0]  %s260, 128, %s262, [#allocation5]
    $region53: #{tpu_custom_call.1} parent=1 // pred_fallthru
      _
    // Predicated region
    $region54: #{tpu_custom_call.1} parent=1 // pred_check
      _
    $region55: #{tpu_custom_call.1} parent=1 // pred_check_branch
      %266 = sbr.rel (0) target = $region57
    $region56: #{tpu_custom_call.1} parent=1 // pred_region
      _
    $region57: #{tpu_custom_call.1} parent=1 // pred_fallthru
      _
    // Predicated region
    $region58: #{tpu_custom_call.1} parent=1 // pred_check
      _
    $region59: #{tpu_custom_call.1} parent=1 // pred_check_branch
      %268 = sbr.rel (0) target = $region61
    $region60: #{tpu_custom_call.1} parent=1 // pred_region
      %270 = dma.done [#allocation5], 128
    $region61: #{tpu_custom_call.1} parent=1 // pred_fallthru
      _
    // Predicated region
    $region62: #{tpu_custom_call.1} parent=1 // pred_check
      _
    $region63: #{tpu_custom_call.1} parent=1 // pred_check_branch
      %272 = sbr.rel (0) target = $region65
    $region64: #{tpu_custom_call.1} parent=1 // pred_region
      _
    $region65: #{tpu_custom_call.1} parent=1 // pred_fallthru
      _
    %273 = vsyncpa [#allocation4], 1
    %274 = vsyncpa [#allocation5], 1

</llo_original>
